<compile_context>
chip_gen: v7x
topology: tpu7x:2x2x1
jax: 0.10.0
libtpu: 0.0.40
codegen_flags: <defaults>
</compile_context>

<pallas_src>
import jax
import jax.numpy as jnp
import numpy as np
from jax.experimental import pallas as pl
from jax.experimental.pallas import tpu as pltpu

EPS = 1e-5  # PyTorch BatchNorm1d default eps


# ------------------------------ fused BatchRNN kernel ---------------------------------
def _make_batch_rnn_kernel(T, N, F, H, use_bn, num_dir, matmul_dtype):
    """Returns kernel(x2d, gamma, beta, wih, whh, out) operating fully in VMEM.

    x2d:   (T*N, F)      float32
    gamma: (1, F)        float32   (unused if use_bn=False)
    beta:  (1, F)        float32   (unused if use_bn=False)
    wih:   (num_dir, F, 4H)  matmul_dtype   (= w_ih.T per direction, gate order i,f,g,o)
    whh:   (num_dir, H, 4H)  matmul_dtype   (= w_hh.T per direction)
    out:   (T, N, H)
    """

    def kernel(x_ref, gamma_ref, beta_ref, wih_ref, whh_ref, o_ref):
        x = x_ref[...].astype(jnp.float32)                              # (T*N, F)

        if use_bn:
            # SequenceWise(BatchNorm1d): stats over the flattened (T*N) batch dim.
            mean = jnp.mean(x, axis=0, keepdims=True)                   # (1, F)
            var = jnp.mean(jnp.square(x - mean), axis=0, keepdims=True)  # biased
            x = (x - mean) * jax.lax.rsqrt(var + EPS) * gamma_ref[...] + beta_ref[...]

        x_mm = x.astype(matmul_dtype)

        ys = [[None] * T for _ in range(num_dir)]
        for d in range(num_dir):
            wih = wih_ref[d]                                            # (F, 4H)
            whh = whh_ref[d]                                            # (H, 4H)

            # Hoisted input projection: one big lane-dense MXU matmul for all T steps.
            gx = jnp.dot(x_mm, wih, preferred_element_type=jnp.float32)  # (T*N, 4H)

            h = jnp.zeros((N, H), jnp.float32)
            c = jnp.zeros((N, H), jnp.float32)
            order = range(T) if d == 0 else range(T - 1, -1, -1)
            for t in order:
                # Per-step serial work: one (N,H)x(H,4H) matmul + elementwise gates.
                gates = gx[t * N:(t + 1) * N, :] + jnp.dot(
                    h.astype(matmul_dtype), whh,
                    preferred_element_type=jnp.float32)                  # (N, 4H)
                i_g = jax.nn.sigmoid(gates[:, 0 * H:1 * H])
                f_g = jax.nn.sigmoid(gates[:, 1 * H:2 * H])
                g_g = jnp.tanh(gates[:, 2 * H:3 * H])
                o_g = jax.nn.sigmoid(gates[:, 3 * H:4 * H])
                c = f_g * c + i_g * g_g
                h = o_g * jnp.tanh(c)
                ys[d][t] = h

        # Single pass over the VMEM-resident output block (written back to HBM once).
        for t in range(T):
            y_t = ys[0][t]
            for d in range(1, num_dir):
                y_t = y_t + ys[d][t]     # bidirectional: sum over directions
            o_ref[t] = y_t.astype(o_ref.dtype)

    return kernel


def batch_rnn_forward(x, params, *, bidirectional=False, batch_norm=True,
                      matmul_dtype=jnp.bfloat16):
    """x: (T, N, F).  params hold PyTorch-layout weights: w_ih_* (4H, F), w_hh_* (4H, H)."""
    T, N, F = x.shape
    H = params["w_hh_l0"].shape[1]
    names = ["l0"] + (["l0_rev"] if bidirectional else [])
    num_dir = len(names)

    # Fuse the 4 per-gate slabs into lane-dense 2D matrices: x @ w_ih.T gives the
    # (i|f|g|o) gate slab directly (PyTorch gate order preserved as column blocks).
    wih = jnp.stack([params[f"w_ih_{n}"].T for n in names]).astype(matmul_dtype)  # (D,F,4H)
    whh = jnp.stack([params[f"w_hh_{n}"].T for n in names]).astype(matmul_dtype)  # (D,H,4H)
    gamma = params["bn_gamma"].reshape(1, F).astype(jnp.float32)
    beta = params["bn_beta"].reshape(1, F).astype(jnp.float32)
    x2d = x.reshape(T * N, F)   # 2D layout for BN stats + the hoisted projection matmul

    kernel = _make_batch_rnn_kernel(T, N, F, H, batch_norm, num_dir, matmul_dtype)
    vmem = pl.BlockSpec(memory_space=pltpu.MemorySpace.VMEM)
    return pl.pallas_call(
        kernel,
        out_shape=jax.ShapeDtypeStruct((T, N, H), x.dtype),
        in_specs=[vmem, vmem, vmem, vmem, vmem],
        out_specs=vmem,
    )(x2d, gamma, beta, wih, whh)


# --------------------------------- pure-JAX reference ----------------------------------
def _lstm_ref(x, w_ih, w_hh):
    _, N, _ = x.shape
    H = w_hh.shape[1]

    def step(carry, x_t):
        h, c = carry
        gates = x_t @ w_ih.T + h @ w_hh.T
        i, f, g, o = jnp.split(gates, 4, axis=-1)
        i, f, o = jax.nn.sigmoid(i), jax.nn.sigmoid(f), jax.nn.sigmoid(o)
        g = jnp.tanh(g)
        c = f * c + i * g
        h = o * jnp.tanh(c)
        return (h, c), h

    _, ys = jax.lax.scan(step, (jnp.zeros((N, H)), jnp.zeros((N, H))), x)
    return ys


def _batch_rnn_ref(x, params, bidirectional=False):
    T, N, F = x.shape
    xf = x.reshape(T * N, F)
    mean = xf.mean(0)
    var = ((xf - mean) ** 2).mean(0)
    xf = (xf - mean) / jnp.sqrt(var + EPS) * params["bn_gamma"] + params["bn_beta"]
    xn = xf.reshape(T, N, F)
    y = _lstm_ref(xn, params["w_ih_l0"], params["w_hh_l0"])
    if bidirectional:
        y_b = _lstm_ref(xn[::-1], params["w_ih_l0_rev"], params["w_hh_l0_rev"])[::-1]
        y = y + y_b
    return y


# ---------------------------------------- main ------------------------------------------
if __name__ == "__main__":
    T, N, IN, H = 8, 2, 32, 32

    key = jax.random.PRNGKey(0)
    k_x, k1, k2, k3, k4 = jax.random.split(key, 5)
    x = jax.random.normal(k_x, (T, N, IN), dtype=jnp.float32)

    # PyTorch LSTM init: U(-1/sqrt(H), 1/sqrt(H)); BatchNorm1d: gamma=1, beta=0.
    bound = 1.0 / np.sqrt(H)
    params = {
        "bn_gamma": jnp.ones((IN,), jnp.float32),
        "bn_beta": jnp.zeros((IN,), jnp.float32),
        "w_ih_l0": jax.random.uniform(k1, (4 * H, IN), jnp.float32, -bound, bound),
        "w_hh_l0": jax.random.uniform(k2, (4 * H, H), jnp.float32, -bound, bound),
        "w_ih_l0_rev": jax.random.uniform(k3, (4 * H, IN), jnp.float32, -bound, bound),
        "w_hh_l0_rev": jax.random.uniform(k4, (4 * H, H), jnp.float32, -bound, bound),
    }

    # unidirectional (module defaults)
    out = batch_rnn_forward(x, params, bidirectional=False, batch_norm=True)
    out = jax.block_until_ready(out)
    ref = _batch_rnn_ref(x, params, bidirectional=False)
    assert out.shape == (T, N, H), out.shape
    np.testing.assert_allclose(np.asarray(out), np.asarray(ref), rtol=2e-2, atol=2e-2)

    # bidirectional (summed directions, as the module does)
    out_bi = batch_rnn_forward(x, params, bidirectional=True, batch_norm=True)
    out_bi = jax.block_until_ready(out_bi)
    ref_bi = _batch_rnn_ref(x, params, bidirectional=True)
    np.testing.assert_allclose(np.asarray(out_bi), np.asarray(ref_bi), rtol=2e-2, atol=2e-2)

    print("KERNEL_OK")
</pallas_src>

<mosaic_0001>
module attributes {stable_mosaic.version = 11 : i64} {
  func.func @kernel(%arg0: memref<16x32xf32, #tpu.memory_space<vmem>>, %arg1: memref<1x32xf32, #tpu.memory_space<vmem>>, %arg2: memref<1x32xf32, #tpu.memory_space<vmem>>, %arg3: memref<1x32x128xbf16, #tpu.memory_space<vmem>>, %arg4: memref<1x32x128xbf16, #tpu.memory_space<vmem>>, %arg5: memref<8x2x32xf32, #tpu.memory_space<vmem>>) attributes {dimension_semantics = [], scalar_prefetch = 0 : i64, scratch_operands = 0 : i64, tpu.core_type = #tpu.core_type<tc>} {
    %c0 = arith.constant 0 : index
    %c0_0 = arith.constant 0 : index
    %0 = vector.load %arg0[%c0, %c0_0] : memref<16x32xf32, #tpu.memory_space<vmem>>, vector<16x32xf32>
    %cst = arith.constant dense<0.000000e+00> : vector<32xf32>
    %1 = vector.multi_reduction <add>, %0, %cst [0] : vector<16x32xf32> to vector<32xf32>
    %2 = vector.shape_cast %1 : vector<32xf32> to vector<1x32xf32>
    %cst_1 = arith.constant 1.600000e+01 : f32
    %3 = vector.broadcast %cst_1 : f32 to vector<1x32xf32>
    %4 = arith.divf %2, %3 : vector<1x32xf32>
    %5 = vector.broadcast %4 : vector<1x32xf32> to vector<16x32xf32>
    %6 = arith.subf %0, %5 : vector<16x32xf32>
    %7 = arith.mulf %6, %6 : vector<16x32xf32>
    %cst_2 = arith.constant dense<0.000000e+00> : vector<32xf32>
    %8 = vector.multi_reduction <add>, %7, %cst_2 [0] : vector<16x32xf32> to vector<32xf32>
    %9 = vector.shape_cast %8 : vector<32xf32> to vector<1x32xf32>
    %cst_3 = arith.constant 1.600000e+01 : f32
    %10 = vector.broadcast %cst_3 : f32 to vector<1x32xf32>
    %11 = arith.divf %9, %10 : vector<1x32xf32>
    %12 = vector.broadcast %4 : vector<1x32xf32> to vector<16x32xf32>
    %13 = arith.subf %0, %12 : vector<16x32xf32>
    %cst_4 = arith.constant 9.99999974E-6 : f32
    %14 = vector.broadcast %cst_4 : f32 to vector<1x32xf32>
    %15 = arith.addf %11, %14 : vector<1x32xf32>
    %16 = math.rsqrt %15 : vector<1x32xf32>
    %17 = vector.broadcast %16 : vector<1x32xf32> to vector<16x32xf32>
    %18 = arith.mulf %13, %17 : vector<16x32xf32>
    %c0_5 = arith.constant 0 : index
    %c0_6 = arith.constant 0 : index
    %19 = vector.load %arg1[%c0_5, %c0_6] : memref<1x32xf32, #tpu.memory_space<vmem>>, vector<1x32xf32>
    %20 = vector.broadcast %19 : vector<1x32xf32> to vector<16x32xf32>
    %21 = arith.mulf %18, %20 : vector<16x32xf32>
    %c0_7 = arith.constant 0 : index
    %c0_8 = arith.constant 0 : index
    %22 = vector.load %arg2[%c0_7, %c0_8] : memref<1x32xf32, #tpu.memory_space<vmem>>, vector<1x32xf32>
    %23 = vector.broadcast %22 : vector<1x32xf32> to vector<16x32xf32>
    %24 = arith.addf %21, %23 : vector<16x32xf32>
    %25 = arith.truncf %24 : vector<16x32xf32> to vector<16x32xbf16>
    %c0_9 = arith.constant 0 : index
    %c0_10 = arith.constant 0 : index
    %c0_11 = arith.constant 0 : index
    %26 = vector.load %arg3[%c0_9, %c0_10, %c0_11] : memref<1x32x128xbf16, #tpu.memory_space<vmem>>, vector<1x32x128xbf16>
    %27 = vector.shape_cast %26 : vector<1x32x128xbf16> to vector<32x128xbf16>
    %c0_12 = arith.constant 0 : index
    %c0_13 = arith.constant 0 : index
    %c0_14 = arith.constant 0 : index
    %28 = vector.load %arg4[%c0_12, %c0_13, %c0_14] : memref<1x32x128xbf16, #tpu.memory_space<vmem>>, vector<1x32x128xbf16>
    %29 = vector.shape_cast %28 : vector<1x32x128xbf16> to vector<32x128xbf16>
    %cst_15 = arith.constant dense<0.000000e+00> : vector<16x128xf32>
    %30 = tpu.matmul %25, %27, %cst_15 {dimension_numbers = #tpu.dot_dimension_numbers<[1], [0], [0], [1], [0, 0, 1, 1], [], []>} : vector<16x32xbf16>, vector<32x128xbf16>, vector<16x128xf32> -> vector<16x128xf32>
    %cst_16 = arith.constant 0.000000e+00 : f32
    %31 = vector.broadcast %cst_16 : f32 to vector<2x32xf32>
    %cst_17 = arith.constant 0.000000e+00 : f32
    %32 = vector.broadcast %cst_17 : f32 to vector<2x32xf32>
    %33 = vector.extract_strided_slice %30 {offsets = [0, 0], sizes = [2, 128], strides = [1, 1]} : vector<16x128xf32> to vector<2x128xf32>
    %34 = arith.truncf %31 : vector<2x32xf32> to vector<2x32xbf16>
    %cst_18 = arith.constant dense<0.000000e+00> : vector<2x128xf32>
    %35 = tpu.matmul %34, %29, %cst_18 {dimension_numbers = #tpu.dot_dimension_numbers<[1], [0], [0], [1], [0, 0, 1, 1], [], []>} : vector<2x32xbf16>, vector<32x128xbf16>, vector<2x128xf32> -> vector<2x128xf32>
    %36 = arith.addf %33, %35 : vector<2x128xf32>
    %37 = vector.extract_strided_slice %36 {offsets = [0, 0], sizes = [2, 32], strides = [1, 1]} : vector<2x128xf32> to vector<2x32xf32>
    %38 = arith.negf %37 : vector<2x32xf32>
    %39 = math.exp %38 : vector<2x32xf32>
    %cst_19 = arith.constant 1.000000e+00 : f32
    %40 = vector.broadcast %cst_19 : f32 to vector<2x32xf32>
    %41 = arith.addf %40, %39 : vector<2x32xf32>
    %42 = arith.divf %40, %41 : vector<2x32xf32>
    %43 = vector.extract_strided_slice %36 {offsets = [0, 32], sizes = [2, 32], strides = [1, 1]} : vector<2x128xf32> to vector<2x32xf32>
    %44 = arith.negf %43 : vector<2x32xf32>
    %45 = math.exp %44 : vector<2x32xf32>
    %cst_20 = arith.constant 1.000000e+00 : f32
    %46 = vector.broadcast %cst_20 : f32 to vector<2x32xf32>
    %47 = arith.addf %46, %45 : vector<2x32xf32>
    %48 = arith.divf %46, %47 : vector<2x32xf32>
    %49 = vector.extract_strided_slice %36 {offsets = [0, 64], sizes = [2, 32], strides = [1, 1]} : vector<2x128xf32> to vector<2x32xf32>
    %50 = math.tanh %49 : vector<2x32xf32>
    %51 = vector.extract_strided_slice %36 {offsets = [0, 96], sizes = [2, 32], strides = [1, 1]} : vector<2x128xf32> to vector<2x32xf32>
    %52 = arith.negf %51 : vector<2x32xf32>
    %53 = math.exp %52 : vector<2x32xf32>
    %cst_21 = arith.constant 1.000000e+00 : f32
    %54 = vector.broadcast %cst_21 : f32 to vector<2x32xf32>
    %55 = arith.addf %54, %53 : vector<2x32xf32>
    %56 = arith.divf %54, %55 : vector<2x32xf32>
    %57 = arith.mulf %48, %32 : vector<2x32xf32>
    %58 = arith.mulf %42, %50 : vector<2x32xf32>
    %59 = arith.addf %57, %58 : vector<2x32xf32>
    %60 = math.tanh %59 : vector<2x32xf32>
    %61 = arith.mulf %56, %60 : vector<2x32xf32>
    %62 = vector.extract_strided_slice %30 {offsets = [2, 0], sizes = [2, 128], strides = [1, 1]} : vector<16x128xf32> to vector<2x128xf32>
    %63 = arith.truncf %61 : vector<2x32xf32> to vector<2x32xbf16>
    %cst_22 = arith.constant dense<0.000000e+00> : vector<2x128xf32>
    %64 = tpu.matmul %63, %29, %cst_22 {dimension_numbers = #tpu.dot_dimension_numbers<[1], [0], [0], [1], [0, 0, 1, 1], [], []>} : vector<2x32xbf16>, vector<32x128xbf16>, vector<2x128xf32> -> vector<2x128xf32>
    %65 = arith.addf %62, %64 : vector<2x128xf32>
    %66 = vector.extract_strided_slice %65 {offsets = [0, 0], sizes = [2, 32], strides = [1, 1]} : vector<2x128xf32> to vector<2x32xf32>
    %67 = arith.negf %66 : vector<2x32xf32>
    %68 = math.exp %67 : vector<2x32xf32>
    %cst_23 = arith.constant 1.000000e+00 : f32
    %69 = vector.broadcast %cst_23 : f32 to vector<2x32xf32>
    %70 = arith.addf %69, %68 : vector<2x32xf32>
    %71 = arith.divf %69, %70 : vector<2x32xf32>
    %72 = vector.extract_strided_slice %65 {offsets = [0, 32], sizes = [2, 32], strides = [1, 1]} : vector<2x128xf32> to vector<2x32xf32>
    %73 = arith.negf %72 : vector<2x32xf32>
    %74 = math.exp %73 : vector<2x32xf32>
    %cst_24 = arith.constant 1.000000e+00 : f32
    %75 = vector.broadcast %cst_24 : f32 to vector<2x32xf32>
    %76 = arith.addf %75, %74 : vector<2x32xf32>
    %77 = arith.divf %75, %76 : vector<2x32xf32>
    %78 = vector.extract_strided_slice %65 {offsets = [0, 64], sizes = [2, 32], strides = [1, 1]} : vector<2x128xf32> to vector<2x32xf32>
    %79 = math.tanh %78 : vector<2x32xf32>
    %80 = vector.extract_strided_slice %65 {offsets = [0, 96], sizes = [2, 32], strides = [1, 1]} : vector<2x128xf32> to vector<2x32xf32>
    %81 = arith.negf %80 : vector<2x32xf32>
    %82 = math.exp %81 : vector<2x32xf32>
    %cst_25 = arith.constant 1.000000e+00 : f32
    %83 = vector.broadcast %cst_25 : f32 to vector<2x32xf32>
    %84 = arith.addf %83, %82 : vector<2x32xf32>
    %85 = arith.divf %83, %84 : vector<2x32xf32>
    %86 = arith.mulf %77, %59 : vector<2x32xf32>
    %87 = arith.mulf %71, %79 : vector<2x32xf32>
    %88 = arith.addf %86, %87 : vector<2x32xf32>
    %89 = math.tanh %88 : vector<2x32xf32>
    %90 = arith.mulf %85, %89 : vector<2x32xf32>
    %91 = vector.extract_strided_slice %30 {offsets = [4, 0], sizes = [2, 128], strides = [1, 1]} : vector<16x128xf32> to vector<2x128xf32>
    %92 = arith.truncf %90 : vector<2x32xf32> to vector<2x32xbf16>
    %cst_26 = arith.constant dense<0.000000e+00> : vector<2x128xf32>
    %93 = tpu.matmul %92, %29, %cst_26 {dimension_numbers = #tpu.dot_dimension_numbers<[1], [0], [0], [1], [0, 0, 1, 1], [], []>} : vector<2x32xbf16>, vector<32x128xbf16>, vector<2x128xf32> -> vector<2x128xf32>
    %94 = arith.addf %91, %93 : vector<2x128xf32>
    %95 = vector.extract_strided_slice %94 {offsets = [0, 0], sizes = [2, 32], strides = [1, 1]} : vector<2x128xf32> to vector<2x32xf32>
    %96 = arith.negf %95 : vector<2x32xf32>
    %97 = math.exp %96 : vector<2x32xf32>
    %cst_27 = arith.constant 1.000000e+00 : f32
    %98 = vector.broadcast %cst_27 : f32 to vector<2x32xf32>
    %99 = arith.addf %98, %97 : vector<2x32xf32>
    %100 = arith.divf %98, %99 : vector<2x32xf32>
    %101 = vector.extract_strided_slice %94 {offsets = [0, 32], sizes = [2, 32], strides = [1, 1]} : vector<2x128xf32> to vector<2x32xf32>
    %102 = arith.negf %101 : vector<2x32xf32>
    %103 = math.exp %102 : vector<2x32xf32>
    %cst_28 = arith.constant 1.000000e+00 : f32
    %104 = vector.broadcast %cst_28 : f32 to vector<2x32xf32>
    %105 = arith.addf %104, %103 : vector<2x32xf32>
    %106 = arith.divf %104, %105 : vector<2x32xf32>
    %107 = vector.extract_strided_slice %94 {offsets = [0, 64], sizes = [2, 32], strides = [1, 1]} : vector<2x128xf32> to vector<2x32xf32>
    %108 = math.tanh %107 : vector<2x32xf32>
    %109 = vector.extract_strided_slice %94 {offsets = [0, 96], sizes = [2, 32], strides = [1, 1]} : vector<2x128xf32> to vector<2x32xf32>
    %110 = arith.negf %109 : vector<2x32xf32>
    %111 = math.exp %110 : vector<2x32xf32>
    %cst_29 = arith.constant 1.000000e+00 : f32
    %112 = vector.broadcast %cst_29 : f32 to vector<2x32xf32>
    %113 = arith.addf %112, %111 : vector<2x32xf32>
    %114 = arith.divf %112, %113 : vector<2x32xf32>
    %115 = arith.mulf %106, %88 : vector<2x32xf32>
    %116 = arith.mulf %100, %108 : vector<2x32xf32>
    %117 = arith.addf %115, %116 : vector<2x32xf32>
    %118 = math.tanh %117 : vector<2x32xf32>
    %119 = arith.mulf %114, %118 : vector<2x32xf32>
    %120 = vector.extract_strided_slice %30 {offsets = [6, 0], sizes = [2, 128], strides = [1, 1]} : vector<16x128xf32> to vector<2x128xf32>
    %121 = arith.truncf %119 : vector<2x32xf32> to vector<2x32xbf16>
    %cst_30 = arith.constant dense<0.000000e+00> : vector<2x128xf32>
    %122 = tpu.matmul %121, %29, %cst_30 {dimension_numbers = #tpu.dot_dimension_numbers<[1], [0], [0], [1], [0, 0, 1, 1], [], []>} : vector<2x32xbf16>, vector<32x128xbf16>, vector<2x128xf32> -> vector<2x128xf32>
    %123 = arith.addf %120, %122 : vector<2x128xf32>
    %124 = vector.extract_strided_slice %123 {offsets = [0, 0], sizes = [2, 32], strides = [1, 1]} : vector<2x128xf32> to vector<2x32xf32>
    %125 = arith.negf %124 : vector<2x32xf32>
    %126 = math.exp %125 : vector<2x32xf32>
    %cst_31 = arith.constant 1.000000e+00 : f32
    %127 = vector.broadcast %cst_31 : f32 to vector<2x32xf32>
    %128 = arith.addf %127, %126 : vector<2x32xf32>
    %129 = arith.divf %127, %128 : vector<2x32xf32>
    %130 = vector.extract_strided_slice %123 {offsets = [0, 32], sizes = [2, 32], strides = [1, 1]} : vector<2x128xf32> to vector<2x32xf32>
    %131 = arith.negf %130 : vector<2x32xf32>
    %132 = math.exp %131 : vector<2x32xf32>
    %cst_32 = arith.constant 1.000000e+00 : f32
    %133 = vector.broadcast %cst_32 : f32 to vector<2x32xf32>
    %134 = arith.addf %133, %132 : vector<2x32xf32>
    %135 = arith.divf %133, %134 : vector<2x32xf32>
    %136 = vector.extract_strided_slice %123 {offsets = [0, 64], sizes = [2, 32], strides = [1, 1]} : vector<2x128xf32> to vector<2x32xf32>
    %137 = math.tanh %136 : vector<2x32xf32>
    %138 = vector.extract_strided_slice %123 {offsets = [0, 96], sizes = [2, 32], strides = [1, 1]} : vector<2x128xf32> to vector<2x32xf32>
    %139 = arith.negf %138 : vector<2x32xf32>
    %140 = math.exp %139 : vector<2x32xf32>
    %cst_33 = arith.constant 1.000000e+00 : f32
    %141 = vector.broadcast %cst_33 : f32 to vector<2x32xf32>
    %142 = arith.addf %141, %140 : vector<2x32xf32>
    %143 = arith.divf %141, %142 : vector<2x32xf32>
    %144 = arith.mulf %135, %117 : vector<2x32xf32>
    %145 = arith.mulf %129, %137 : vector<2x32xf32>
    %146 = arith.addf %144, %145 : vector<2x32xf32>
    %147 = math.tanh %146 : vector<2x32xf32>
    %148 = arith.mulf %143, %147 : vector<2x32xf32>
    %149 = vector.extract_strided_slice %30 {offsets = [8, 0], sizes = [2, 128], strides = [1, 1]} : vector<16x128xf32> to vector<2x128xf32>
    %150 = arith.truncf %148 : vector<2x32xf32> to vector<2x32xbf16>
    %cst_34 = arith.constant dense<0.000000e+00> : vector<2x128xf32>
    %151 = tpu.matmul %150, %29, %cst_34 {dimension_numbers = #tpu.dot_dimension_numbers<[1], [0], [0], [1], [0, 0, 1, 1], [], []>} : vector<2x32xbf16>, vector<32x128xbf16>, vector<2x128xf32> -> vector<2x128xf32>
    %152 = arith.addf %149, %151 : vector<2x128xf32>
    %153 = vector.extract_strided_slice %152 {offsets = [0, 0], sizes = [2, 32], strides = [1, 1]} : vector<2x128xf32> to vector<2x32xf32>
    %154 = arith.negf %153 : vector<2x32xf32>
    %155 = math.exp %154 : vector<2x32xf32>
    %cst_35 = arith.constant 1.000000e+00 : f32
    %156 = vector.broadcast %cst_35 : f32 to vector<2x32xf32>
    %157 = arith.addf %156, %155 : vector<2x32xf32>
    %158 = arith.divf %156, %157 : vector<2x32xf32>
    %159 = vector.extract_strided_slice %152 {offsets = [0, 32], sizes = [2, 32], strides = [1, 1]} : vector<2x128xf32> to vector<2x32xf32>
    %160 = arith.negf %159 : vector<2x32xf32>
    %161 = math.exp %160 : vector<2x32xf32>
    %cst_36 = arith.constant 1.000000e+00 : f32
    %162 = vector.broadcast %cst_36 : f32 to vector<2x32xf32>
    %163 = arith.addf %162, %161 : vector<2x32xf32>
    %164 = arith.divf %162, %163 : vector<2x32xf32>
    %165 = vector.extract_strided_slice %152 {offsets = [0, 64], sizes = [2, 32], strides = [1, 1]} : vector<2x128xf32> to vector<2x32xf32>
    %166 = math.tanh %165 : vector<2x32xf32>
    %167 = vector.extract_strided_slice %152 {offsets = [0, 96], sizes = [2, 32], strides = [1, 1]} : vector<2x128xf32> to vector<2x32xf32>
    %168 = arith.negf %167 : vector<2x32xf32>
    %169 = math.exp %168 : vector<2x32xf32>
    %cst_37 = arith.constant 1.000000e+00 : f32
    %170 = vector.broadcast %cst_37 : f32 to vector<2x32xf32>
    %171 = arith.addf %170, %169 : vector<2x32xf32>
    %172 = arith.divf %170, %171 : vector<2x32xf32>
    %173 = arith.mulf %164, %146 : vector<2x32xf32>
    %174 = arith.mulf %158, %166 : vector<2x32xf32>
    %175 = arith.addf %173, %174 : vector<2x32xf32>
    %176 = math.tanh %175 : vector<2x32xf32>
    %177 = arith.mulf %172, %176 : vector<2x32xf32>
    %178 = vector.extract_strided_slice %30 {offsets = [10, 0], sizes = [2, 128], strides = [1, 1]} : vector<16x128xf32> to vector<2x128xf32>
    %179 = arith.truncf %177 : vector<2x32xf32> to vector<2x32xbf16>
    %cst_38 = arith.constant dense<0.000000e+00> : vector<2x128xf32>
    %180 = tpu.matmul %179, %29, %cst_38 {dimension_numbers = #tpu.dot_dimension_numbers<[1], [0], [0], [1], [0, 0, 1, 1], [], []>} : vector<2x32xbf16>, vector<32x128xbf16>, vector<2x128xf32> -> vector<2x128xf32>
    %181 = arith.addf %178, %180 : vector<2x128xf32>
    %182 = vector.extract_strided_slice %181 {offsets = [0, 0], sizes = [2, 32], strides = [1, 1]} : vector<2x128xf32> to vector<2x32xf32>
    %183 = arith.negf %182 : vector<2x32xf32>
    %184 = math.exp %183 : vector<2x32xf32>
    %cst_39 = arith.constant 1.000000e+00 : f32
    %185 = vector.broadcast %cst_39 : f32 to vector<2x32xf32>
    %186 = arith.addf %185, %184 : vector<2x32xf32>
    %187 = arith.divf %185, %186 : vector<2x32xf32>
    %188 = vector.extract_strided_slice %181 {offsets = [0, 32], sizes = [2, 32], strides = [1, 1]} : vector<2x128xf32> to vector<2x32xf32>
    %189 = arith.negf %188 : vector<2x32xf32>
    %190 = math.exp %189 : vector<2x32xf32>
    %cst_40 = arith.constant 1.000000e+00 : f32
    %191 = vector.broadcast %cst_40 : f32 to vector<2x32xf32>
    %192 = arith.addf %191, %190 : vector<2x32xf32>
    %193 = arith.divf %191, %192 : vector<2x32xf32>
    %194 = vector.extract_strided_slice %181 {offsets = [0, 64], sizes = [2, 32], strides = [1, 1]} : vector<2x128xf32> to vector<2x32xf32>
    %195 = math.tanh %194 : vector<2x32xf32>
    %196 = vector.extract_strided_slice %181 {offsets = [0, 96], sizes = [2, 32], strides = [1, 1]} : vector<2x128xf32> to vector<2x32xf32>
    %197 = arith.negf %196 : vector<2x32xf32>
    %198 = math.exp %197 : vector<2x32xf32>
    %cst_41 = arith.constant 1.000000e+00 : f32
    %199 = vector.broadcast %cst_41 : f32 to vector<2x32xf32>
    %200 = arith.addf %199, %198 : vector<2x32xf32>
    %201 = arith.divf %199, %200 : vector<2x32xf32>
    %202 = arith.mulf %193, %175 : vector<2x32xf32>
    %203 = arith.mulf %187, %195 : vector<2x32xf32>
    %204 = arith.addf %202, %203 : vector<2x32xf32>
    %205 = math.tanh %204 : vector<2x32xf32>
    %206 = arith.mulf %201, %205 : vector<2x32xf32>
    %207 = vector.extract_strided_slice %30 {offsets = [12, 0], sizes = [2, 128], strides = [1, 1]} : vector<16x128xf32> to vector<2x128xf32>
    %208 = arith.truncf %206 : vector<2x32xf32> to vector<2x32xbf16>
    %cst_42 = arith.constant dense<0.000000e+00> : vector<2x128xf32>
    %209 = tpu.matmul %208, %29, %cst_42 {dimension_numbers = #tpu.dot_dimension_numbers<[1], [0], [0], [1], [0, 0, 1, 1], [], []>} : vector<2x32xbf16>, vector<32x128xbf16>, vector<2x128xf32> -> vector<2x128xf32>
    %210 = arith.addf %207, %209 : vector<2x128xf32>
    %211 = vector.extract_strided_slice %210 {offsets = [0, 0], sizes = [2, 32], strides = [1, 1]} : vector<2x128xf32> to vector<2x32xf32>
    %212 = arith.negf %211 : vector<2x32xf32>
    %213 = math.exp %212 : vector<2x32xf32>
    %cst_43 = arith.constant 1.000000e+00 : f32
    %214 = vector.broadcast %cst_43 : f32 to vector<2x32xf32>
    %215 = arith.addf %214, %213 : vector<2x32xf32>
    %216 = arith.divf %214, %215 : vector<2x32xf32>
    %217 = vector.extract_strided_slice %210 {offsets = [0, 32], sizes = [2, 32], strides = [1, 1]} : vector<2x128xf32> to vector<2x32xf32>
    %218 = arith.negf %217 : vector<2x32xf32>
    %219 = math.exp %218 : vector<2x32xf32>
    %cst_44 = arith.constant 1.000000e+00 : f32
    %220 = vector.broadcast %cst_44 : f32 to vector<2x32xf32>
    %221 = arith.addf %220, %219 : vector<2x32xf32>
    %222 = arith.divf %220, %221 : vector<2x32xf32>
    %223 = vector.extract_strided_slice %210 {offsets = [0, 64], sizes = [2, 32], strides = [1, 1]} : vector<2x128xf32> to vector<2x32xf32>
    %224 = math.tanh %223 : vector<2x32xf32>
    %225 = vector.extract_strided_slice %210 {offsets = [0, 96], sizes = [2, 32], strides = [1, 1]} : vector<2x128xf32> to vector<2x32xf32>
    %226 = arith.negf %225 : vector<2x32xf32>
    %227 = math.exp %226 : vector<2x32xf32>
    %cst_45 = arith.constant 1.000000e+00 : f32
    %228 = vector.broadcast %cst_45 : f32 to vector<2x32xf32>
    %229 = arith.addf %228, %227 : vector<2x32xf32>
    %230 = arith.divf %228, %229 : vector<2x32xf32>
    %231 = arith.mulf %222, %204 : vector<2x32xf32>
    %232 = arith.mulf %216, %224 : vector<2x32xf32>
    %233 = arith.addf %231, %232 : vector<2x32xf32>
    %234 = math.tanh %233 : vector<2x32xf32>
    %235 = arith.mulf %230, %234 : vector<2x32xf32>
    %236 = vector.extract_strided_slice %30 {offsets = [14, 0], sizes = [2, 128], strides = [1, 1]} : vector<16x128xf32> to vector<2x128xf32>
    %237 = arith.truncf %235 : vector<2x32xf32> to vector<2x32xbf16>
    %cst_46 = arith.constant dense<0.000000e+00> : vector<2x128xf32>
    %238 = tpu.matmul %237, %29, %cst_46 {dimension_numbers = #tpu.dot_dimension_numbers<[1], [0], [0], [1], [0, 0, 1, 1], [], []>} : vector<2x32xbf16>, vector<32x128xbf16>, vector<2x128xf32> -> vector<2x128xf32>
    %239 = arith.addf %236, %238 : vector<2x128xf32>
    %240 = vector.extract_strided_slice %239 {offsets = [0, 0], sizes = [2, 32], strides = [1, 1]} : vector<2x128xf32> to vector<2x32xf32>
    %241 = arith.negf %240 : vector<2x32xf32>
    %242 = math.exp %241 : vector<2x32xf32>
    %cst_47 = arith.constant 1.000000e+00 : f32
    %243 = vector.broadcast %cst_47 : f32 to vector<2x32xf32>
    %244 = arith.addf %243, %242 : vector<2x32xf32>
    %245 = arith.divf %243, %244 : vector<2x32xf32>
    %246 = vector.extract_strided_slice %239 {offsets = [0, 32], sizes = [2, 32], strides = [1, 1]} : vector<2x128xf32> to vector<2x32xf32>
    %247 = arith.negf %246 : vector<2x32xf32>
    %248 = math.exp %247 : vector<2x32xf32>
    %cst_48 = arith.constant 1.000000e+00 : f32
    %249 = vector.broadcast %cst_48 : f32 to vector<2x32xf32>
    %250 = arith.addf %249, %248 : vector<2x32xf32>
    %251 = arith.divf %249, %250 : vector<2x32xf32>
    %252 = vector.extract_strided_slice %239 {offsets = [0, 64], sizes = [2, 32], strides = [1, 1]} : vector<2x128xf32> to vector<2x32xf32>
    %253 = math.tanh %252 : vector<2x32xf32>
    %254 = vector.extract_strided_slice %239 {offsets = [0, 96], sizes = [2, 32], strides = [1, 1]} : vector<2x128xf32> to vector<2x32xf32>
    %255 = arith.negf %254 : vector<2x32xf32>
    %256 = math.exp %255 : vector<2x32xf32>
    %cst_49 = arith.constant 1.000000e+00 : f32
    %257 = vector.broadcast %cst_49 : f32 to vector<2x32xf32>
    %258 = arith.addf %257, %256 : vector<2x32xf32>
    %259 = arith.divf %257, %258 : vector<2x32xf32>
    %260 = arith.mulf %251, %233 : vector<2x32xf32>
    %261 = arith.mulf %245, %253 : vector<2x32xf32>
    %262 = arith.addf %260, %261 : vector<2x32xf32>
    %263 = math.tanh %262 : vector<2x32xf32>
    %264 = arith.mulf %259, %263 : vector<2x32xf32>
    %c0_50 = arith.constant 0 : index
    %c0_51 = arith.constant 0 : index
    %c0_52 = arith.constant 0 : index
    %265 = vector.load %arg5[%c0_50, %c0_51, %c0_52] : memref<8x2x32xf32, #tpu.memory_space<vmem>>, vector<1x2x32xf32>
    %266 = vector.shape_cast %265 : vector<1x2x32xf32> to vector<2x32xf32>
    %267 = vector.shape_cast %61 : vector<2x32xf32> to vector<1x2x32xf32>
    tpu.vector_store %arg5[%c0_50, %c0_51, %c0_52], %267 {strides = array<i32>} : memref<8x2x32xf32, #tpu.memory_space<vmem>>, vector<1x2x32xf32>,
    %c1 = arith.constant 1 : index
    %c0_53 = arith.constant 0 : index
    %c0_54 = arith.constant 0 : index
    %268 = vector.load %arg5[%c1, %c0_53, %c0_54] : memref<8x2x32xf32, #tpu.memory_space<vmem>>, vector<1x2x32xf32>
    %269 = vector.shape_cast %268 : vector<1x2x32xf32> to vector<2x32xf32>
    %270 = vector.shape_cast %90 : vector<2x32xf32> to vector<1x2x32xf32>
    tpu.vector_store %arg5[%c1, %c0_53, %c0_54], %270 {strides = array<i32>} : memref<8x2x32xf32, #tpu.memory_space<vmem>>, vector<1x2x32xf32>,
    %c2 = arith.constant 2 : index
    %c0_55 = arith.constant 0 : index
    %c0_56 = arith.constant 0 : index
    %271 = vector.load %arg5[%c2, %c0_55, %c0_56] : memref<8x2x32xf32, #tpu.memory_space<vmem>>, vector<1x2x32xf32>
    %272 = vector.shape_cast %271 : vector<1x2x32xf32> to vector<2x32xf32>
    %273 = vector.shape_cast %119 : vector<2x32xf32> to vector<1x2x32xf32>
    tpu.vector_store %arg5[%c2, %c0_55, %c0_56], %273 {strides = array<i32>} : memref<8x2x32xf32, #tpu.memory_space<vmem>>, vector<1x2x32xf32>,
    %c3 = arith.constant 3 : index
    %c0_57 = arith.constant 0 : index
    %c0_58 = arith.constant 0 : index
    %274 = vector.load %arg5[%c3, %c0_57, %c0_58] : memref<8x2x32xf32, #tpu.memory_space<vmem>>, vector<1x2x32xf32>
    %275 = vector.shape_cast %274 : vector<1x2x32xf32> to vector<2x32xf32>
    %276 = vector.shape_cast %148 : vector<2x32xf32> to vector<1x2x32xf32>
    tpu.vector_store %arg5[%c3, %c0_57, %c0_58], %276 {strides = array<i32>} : memref<8x2x32xf32, #tpu.memory_space<vmem>>, vector<1x2x32xf32>,
    %c4 = arith.constant 4 : index
    %c0_59 = arith.constant 0 : index
    %c0_60 = arith.constant 0 : index
    %277 = vector.load %arg5[%c4, %c0_59, %c0_60] : memref<8x2x32xf32, #tpu.memory_space<vmem>>, vector<1x2x32xf32>
    %278 = vector.shape_cast %277 : vector<1x2x32xf32> to vector<2x32xf32>
    %279 = vector.shape_cast %177 : vector<2x32xf32> to vector<1x2x32xf32>
    tpu.vector_store %arg5[%c4, %c0_59, %c0_60], %279 {strides = array<i32>} : memref<8x2x32xf32, #tpu.memory_space<vmem>>, vector<1x2x32xf32>,
    %c5 = arith.constant 5 : index
    %c0_61 = arith.constant 0 : index
    %c0_62 = arith.constant 0 : index
    %280 = vector.load %arg5[%c5, %c0_61, %c0_62] : memref<8x2x32xf32, #tpu.memory_space<vmem>>, vector<1x2x32xf32>
    %281 = vector.shape_cast %280 : vector<1x2x32xf32> to vector<2x32xf32>
    %282 = vector.shape_cast %206 : vector<2x32xf32> to vector<1x2x32xf32>
    tpu.vector_store %arg5[%c5, %c0_61, %c0_62], %282 {strides = array<i32>} : memref<8x2x32xf32, #tpu.memory_space<vmem>>, vector<1x2x32xf32>,
    %c6 = arith.constant 6 : index
    %c0_63 = arith.constant 0 : index
    %c0_64 = arith.constant 0 : index
    %283 = vector.load %arg5[%c6, %c0_63, %c0_64] : memref<8x2x32xf32, #tpu.memory_space<vmem>>, vector<1x2x32xf32>
    %284 = vector.shape_cast %283 : vector<1x2x32xf32> to vector<2x32xf32>
    %285 = vector.shape_cast %235 : vector<2x32xf32> to vector<1x2x32xf32>
    tpu.vector_store %arg5[%c6, %c0_63, %c0_64], %285 {strides = array<i32>} : memref<8x2x32xf32, #tpu.memory_space<vmem>>, vector<1x2x32xf32>,
    %c7 = arith.constant 7 : index
    %c0_65 = arith.constant 0 : index
    %c0_66 = arith.constant 0 : index
    %286 = vector.load %arg5[%c7, %c0_65, %c0_66] : memref<8x2x32xf32, #tpu.memory_space<vmem>>, vector<1x2x32xf32>
    %287 = vector.shape_cast %286 : vector<1x2x32xf32> to vector<2x32xf32>
    %288 = vector.shape_cast %264 : vector<2x32xf32> to vector<1x2x32xf32>
    tpu.vector_store %arg5[%c7, %c0_65, %c0_66], %288 {strides = array<i32>} : memref<8x2x32xf32, #tpu.memory_space<vmem>>, vector<1x2x32xf32>,
    return
  }
}

</mosaic_0001>

<llo_original>
// kernel: tpu_custom_call.1
$region0: #{tpu_custom_call.1}
  #allocation0 [shape = 'u32[]', space=smem, size = 0x4, offset = 0x4, fixed_abs, tag = 'smem constant byte address 0x4 - core index']
  #allocation1 [shape = 'u32[144,128]{1,0:T(1,128)}', space=vmem, size = 0x12000, scoped, tag = 'internal scratch']
  %s0 = inlined_call_operand.hbm [shape: f32[16,32], index: 0, kind: input, shape index: {}]
  %s1 = inlined_call_operand.vmem [shape: f32[1,32], index: 1, kind: input, shape index: {}]
  %s2 = inlined_call_operand.vmem [shape: f32[1,32], index: 2, kind: input, shape index: {}]
  %s3 = inlined_call_operand.hbm [shape: bf16[1,32,128], index: 3, kind: input, shape index: {}]
  %s4 = inlined_call_operand.hbm [shape: bf16[1,32,128], index: 4, kind: input, shape index: {}]
  %s5 = inlined_call_operand.hbm [shape: f32[8,2,32], index: 5, kind: output, shape index: {}]
  %s6 = sld [smem:[#allocation0]]
  $region42: #{tpu_custom_call.1} parent=0
    _
  %s8 = ssub.s32 1, %s6
  %s9 = scalar_select 0, %s8, %s6
  $region1: #{tpu_custom_call.1} parent=0
    #allocation2 [shape = 'u8[8192]{0}', space=vmem, size = 0x2000, scoped, tag = 'input window, operand 0, single buffered']
    #allocation3 [shape = 's32[1]{0}', space=sflag, size = 0x4, scoped, tag = 'scoped memory for tpu_custom_call.1']
    #allocation4 [shape = 's32[1]{0}', space=sflag, size = 0x4, scoped, tag = 'scoped memory for tpu_custom_call.1']
    #allocation5 [shape = 'u8[8192]{0}', space=vmem, size = 0x2000, scoped, tag = 'input window, operand 3, single buffered']
    #allocation6 [shape = 's32[1]{0}', space=sflag, size = 0x4, scoped, tag = 'scoped memory for tpu_custom_call.1']
    #allocation7 [shape = 'u8[8192]{0}', space=vmem, size = 0x2000, scoped, tag = 'input window, operand 4, single buffered']
    #allocation8 [shape = 'u8[8192]{0}', space=vmem, size = 0x2000, scoped, tag = 'output window, operand 0, single buffered']
    %10 = vsyncpa [#allocation3], 0
    %11 = vsyncpa [#allocation6], 0
    %12 = vsyncpa [#allocation4], 0
    // Predicated region
    $region2: #{tpu_custom_call.1} parent=1 // pred_check
      _
    $region3: #{tpu_custom_call.1} parent=1 // pred_check_branch
      %14 = sbr.rel (0) target = $region5
    $region4: #{tpu_custom_call.1} parent=1 // pred_region
      %s16 = ssub.s32 256, 256
      %17 = vsyncadd [#allocation3], %s16
      %s18 = sshll.u32 [#allocation2], 4
      %s19 = int_to_ptr.vmem [resolvable:$true] %s18
      %24 = dma.hbm_to_vmem [thread:$0]  %s0, 256, %s19, [#allocation3], 128, 128, 8
    $region5: #{tpu_custom_call.1} parent=1 // pred_fallthru
      _
    // Predicated region
    $region6: #{tpu_custom_call.1} parent=1 // pred_check
      _
    $region7: #{tpu_custom_call.1} parent=1 // pred_check_branch
      %26 = sbr.rel (0) target = $region9
    $region8: #{tpu_custom_call.1} parent=1 // pred_region
      _
    $region9: #{tpu_custom_call.1} parent=1 // pred_fallthru
      _
    // Predicated region
    $region10: #{tpu_custom_call.1} parent=1 // pred_check
      _
    $region11: #{tpu_custom_call.1} parent=1 // pred_check_branch
      %28 = sbr.rel (0) target = $region13
    $region12: #{tpu_custom_call.1} parent=1 // pred_region
      _
    $region13: #{tpu_custom_call.1} parent=1 // pred_fallthru
      _
    // Predicated region
    $region14: #{tpu_custom_call.1} parent=1 // pred_check
      _
    $region15: #{tpu_custom_call.1} parent=1 // pred_check_branch
      %30 = sbr.rel (0) target = $region17
    $region16: #{tpu_custom_call.1} parent=1 // pred_region
      %s32 = ssub.s32 256, 256
      %33 = vsyncadd [#allocation6], %s32
      %s34 = sshll.u32 [#allocation5], 4
      %s35 = int_to_ptr.vmem [resolvable:$true] %s34
      %40 = dma.hbm_to_vmem [thread:$0]  %s3, 256, %s35, [#allocation6], 64, 64, 4
    $region17: #{tpu_custom_call.1} parent=1 // pred_fallthru
      _
    // Predicated region
    $region18: #{tpu_custom_call.1} parent=1 // pred_check
      _
    $region19: #{tpu_custom_call.1} parent=1 // pred_check_branch
      %42 = sbr.rel (0) target = $region21
    $region20: #{tpu_custom_call.1} parent=1 // pred_region
      %s44 = ssub.s32 256, 256
      %45 = vsyncadd [#allocation6], %s44
      %s46 = sshll.u32 [#allocation7], 4
      %s47 = int_to_ptr.vmem [resolvable:$true] %s46
      %52 = dma.hbm_to_vmem [thread:$0]  %s4, 256, %s47, [#allocation6], 64, 64, 4
    $region21: #{tpu_custom_call.1} parent=1 // pred_fallthru
      _
    // Predicated region
    $region22: #{tpu_custom_call.1} parent=1 // pred_check
      _
    $region23: #{tpu_custom_call.1} parent=1 // pred_check_branch
      %54 = sbr.rel (0) target = $region25
    $region24: #{tpu_custom_call.1} parent=1 // pred_region
      %55 = dma.done [#allocation3], 256
    $region25: #{tpu_custom_call.1} parent=1 // pred_fallthru
      _
    // Predicated region
    $region26: #{tpu_custom_call.1} parent=1 // pred_check
      _
    $region27: #{tpu_custom_call.1} parent=1 // pred_check_branch
      %57 = sbr.rel (0) target = $region29
    $region28: #{tpu_custom_call.1} parent=1 // pred_region
      %58 = dma.done [#allocation6], 256
    $region29: #{tpu_custom_call.1} parent=1 // pred_fallthru
      _
    // Predicated region
    $region30: #{tpu_custom_call.1} parent=1 // pred_check
      _
    $region31: #{tpu_custom_call.1} parent=1 // pred_check_branch
      %60 = sbr.rel (0) target = $region33
    $region32: #{tpu_custom_call.1} parent=1 // pred_region
      %61 = dma.done [#allocation6], 256
    $region33: #{tpu_custom_call.1} parent=1 // pred_fallthru
      _
    %v63 = vld [vmem:[#allocation2] sm:$0xff]
    %v64 = vld [vmem:[#allocation2 + $0x8] sm:$0xff]
    %vm65 = vcmask 261120
    %v66 = vsel %vm65, %v63, 0.0
    %v67 = vsel %vm65, %v64, 0.0
    %v68 = vadd.f32 %v66, %v67
    %v69 = vrot.slane %v68, 4
    %v70 = vadd.f32 %v68, %v69
    %v71 = vrot.slane %v70, 2
    %v72 = vadd.f32 %v70, %v71
    %v73 = vrot.slane %v72, 1
    %v74 = vadd.f32 %v72, %v73
    %v75 = vrcp.pop 16.0
    %v76 = vmul.f32 %v74, %v75
    %v77 = vsub.f32 %v63, %v76
    %v78 = vsub.f32 %v64, %v76
    %v79 = vmul.f32 %v77, %v77
    %v80 = vmul.f32 %v78, %v78
    %v81 = vsel %vm65, %v79, 0.0
    %v82 = vsel %vm65, %v80, 0.0
    %v83 = vadd.f32 %v81, %v82
    %v84 = vrot.slane %v83, 4
    %v85 = vadd.f32 %v83, %v84
    %v86 = vrot.slane %v85, 2
    %v87 = vadd.f32 %v85, %v86
    %v88 = vrot.slane %v87, 1
    %v89 = vadd.f32 %v87, %v88
    %v90 = vmul.f32 %v89, %v75
    %v91 = vadd.f32 %v90, 1e-05
    %v92 = vrsqrt.pop %v91
    %v93 = vmul.f32 %v77, %v92
    %v94 = vmul.f32 %v78, %v92
    %v95 = vld [vmem:[%s1] sm:$0x1]
    %v97 = vlaneseq
    %v98 = vshrl.u32 %v97, 7
    %v99 = vsub.s32 0, %v98
    %v100 = vrot.slane %v95, %v99
    %v102 = vmul.f32 %v93, %v100
    %v103 = vmul.f32 %v94, %v100
    %v104 = vld [vmem:[%s2] sm:$0x1]
    %v106 = vlaneseq
    %v107 = vshrl.u32 %v106, 7
    %v108 = vsub.s32 0, %v107
    %v109 = vrot.slane %v104, %v108
    %v111 = vadd.f32 %v102, %v109
    %v112 = vadd.f32 %v103, %v109
    %v113 = vpack.c.bf16 %v112, %v111
    %v114 = vld [vmem:[#allocation5] sm:$0xf]
    %v115 = vld [vmem:[#allocation5 + $0x4] sm:$0xf]
    %v116 = vld [vmem:[#allocation5 + $0x8] sm:$0xf]
    %v117 = vld [vmem:[#allocation5 + $0xc] sm:$0xf]
    %v118 = vld [vmem:[#allocation7] sm:$0xf]
    %v119 = vld [vmem:[#allocation7 + $0x4] sm:$0xf]
    %v120 = vld [vmem:[#allocation7 + $0x8] sm:$0xf]
    %v121 = vld [vmem:[#allocation7 + $0xc] sm:$0xf]
    %v126 = vunpack.c.l.b16 %v114
    %v127 = vunpack.c.l.b16 %v115
    %v128 = vunpack.c.l.b16 %v116
    %v129 = vunpack.c.l.b16 %v117
    %v130 = vpack.c.b16 %v127, %v126
    %v131 = vpack.c.b16 %v129, %v128
    %v135 = vsel %vm65, %v113, 0
    %137 = vmatprep.subr.bf16.mxu0 0
    %138 = vmatpush1.bf16.msra.mxu0 %v130
    %139 = vmatprep.subr.bf16.mxu0 0
    %140 = vmatpush1.bf16.msra.mxu0 %v131
    %141 = vmatprep.subr.bf16.mxu0 0
    %142 = vmatpush1.bf16.msra.mxu0 0
    %143 = vmatprep.subr.bf16.mxu0 0
    %144 = vmatpush1.bf16.msra.mxu0 0
    %145 = vmatprep.subr.bf16.mxu0 0
    %146 = vmatpush1.bf16.msra.mxu0 0
    %147 = vmatprep.subr.bf16.mxu0 0
    %148 = vmatpush1.bf16.msra.mxu0 0
    %149 = vmatprep.subr.bf16.mxu0 0
    %150 = vmatpush1.bf16.msra.mxu0 0
    %151 = vmatprep.subr.bf16.mxu0 0
    %152 = vmatpush1.bf16.msra.mxu0 0
    %153 = vmatprep.subr.bf16.mxu0 0
    %154 = vmatpush1.bf16.msra.mxu0 0
    %155 = vmatprep.subr.bf16.mxu0 0
    %156 = vmatpush1.bf16.msra.mxu0 0
    %157 = vmatprep.subr.bf16.mxu0 0
    %158 = vmatpush1.bf16.msra.mxu0 0
    %159 = vmatprep.subr.bf16.mxu0 0
    %160 = vmatpush1.bf16.msra.mxu0 0
    %161 = vmatprep.subr.bf16.mxu0 0
    %162 = vmatpush1.bf16.msra.mxu0 0
    %163 = vmatprep.subr.bf16.mxu0 0
    %164 = vmatpush1.bf16.msra.mxu0 0
    %165 = vmatprep.subr.bf16.mxu0 0
    %166 = vmatpush1.bf16.msra.mxu0 0
    %167 = vmatprep.subr.bf16.mxu0 0
    %168 = vmatpush1.bf16.msra.mxu0 0
    %169 = vmatprep.mubr.bf16.mxu0 0
    %170 = vmatmul.mubr.bf16.gmra.mrb[0].mxu0 %v135
    %v171 = vpop.f32.mrb[0].mxu0
    %v172 = vadd.f32 0.0, %v171
    %v173 = vpop.f32.mrb[0].mxu0
    %v174 = vpop.f32.mrb[0].mxu0
    %v175 = vadd.f32 0.0, %v174
    %v176 = vpop.f32.mrb[0].mxu0
    %177 = vdwg.mxu0
    %v182 = vunpack.c.l.b16 %v118
    %v183 = vunpack.c.l.b16 %v119
    %v184 = vunpack.c.l.b16 %v120
    %v185 = vunpack.c.l.b16 %v121
    %v186 = vpack.c.b16 %v183, %v182
    %v187 = vpack.c.b16 %v185, %v184
    %v191 = vsel %vm65, 0, 0
    %193 = vmatprep.subr.bf16.mxu0 0
    %194 = vmatpush1.bf16.msra.mxu0 %v186
    %195 = vmatprep.subr.bf16.mxu0 0
    %196 = vmatpush1.bf16.msra.mxu0 %v187
    %197 = vmatprep.subr.bf16.mxu0 0
    %198 = vmatpush1.bf16.msra.mxu0 0
    %199 = vmatprep.subr.bf16.mxu0 0
    %200 = vmatpush1.bf16.msra.mxu0 0
    %201 = vmatprep.subr.bf16.mxu0 0
    %202 = vmatpush1.bf16.msra.mxu0 0
    %203 = vmatprep.subr.bf16.mxu0 0
    %204 = vmatpush1.bf16.msra.mxu0 0
    %205 = vmatprep.subr.bf16.mxu0 0
    %206 = vmatpush1.bf16.msra.mxu0 0
    %207 = vmatprep.subr.bf16.mxu0 0
    %208 = vmatpush1.bf16.msra.mxu0 0
    %209 = vmatprep.subr.bf16.mxu0 0
    %210 = vmatpush1.bf16.msra.mxu0 0
    %211 = vmatprep.subr.bf16.mxu0 0
    %212 = vmatpush1.bf16.msra.mxu0 0
    %213 = vmatprep.subr.bf16.mxu0 0
    %214 = vmatpush1.bf16.msra.mxu0 0
    %215 = vmatprep.subr.bf16.mxu0 0
    %216 = vmatpush1.bf16.msra.mxu0 0
    %217 = vmatprep.subr.bf16.mxu0 0
    %218 = vmatpush1.bf16.msra.mxu0 0
    %219 = vmatprep.subr.bf16.mxu0 0
    %220 = vmatpush1.bf16.msra.mxu0 0
    %221 = vmatprep.subr.bf16.mxu0 0
    %222 = vmatpush1.bf16.msra.mxu0 0
    %223 = vmatprep.subr.bf16.mxu0 0
    %224 = vmatpush1.bf16.msra.mxu0 0
    %225 = vmatprep.mubr.bf16.mxu0 0
    %226 = vmatmul.mubr.bf16.gmra.mrb[0].mxu0 %v191
    %v227 = vpop.f32.mrb[0].mxu0
    %v228 = vadd.f32 0.0, %v227
    %v229 = vpop.f32.mrb[0].mxu0
    %v230 = vpop.f32.mrb[0].mxu0
    %v231 = vpop.f32.mrb[0].mxu0
    %232 = vdwg.mxu0
    %v233 = vadd.f32 %v172, %v228
    %v234 = vxor.u32 %v233, 2147483648
    %v235 = vmul.f32 %v234, 1.442695
    %v236 = vpow.pop %v235
    %v237 = vadd.f32 %v236, 1.0
    %v238 = vrcp.pop %v237
    %v239 = vmul.f32 1.0, %v238
    %v240 = vtanh.pop %v233
    %v241 = vmul.f32 %v239, 0.0
    %243 = vrot.lane.b32.xlu0 %v240, 64
    %v244 = vpop.permute.xlu0 %243
    %v246 = vmul.f32 %v239, %v244
    %248 = vrot.lane.b32.xlu0 %v246, 32
    %v249 = vpop.permute.xlu0 %248
    %v251 = vadd.f32 %v241, %v249
    %v252 = vtanh.pop %v251
    %254 = vrot.lane.b32.xlu0 %v252, 64
    %v255 = vpop.permute.xlu0 %254
    %v257 = vmul.f32 %v239, %v255
    %v258 = vpack.c.bf16 %v257, %v257
    %260 = vrot.lane.b32.xlu0 %v258, 32
    %v261 = vpop.permute.xlu0 %260
    %v263 = vsel %vm65, %v261, 0
    %265 = vmatprep.subr.bf16.mxu0 0
    %266 = vmatpush1.bf16.msra.mxu0 %v186
    %267 = vmatprep.subr.bf16.mxu0 0
    %268 = vmatpush1.bf16.msra.mxu0 %v187
    %269 = vmatprep.subr.bf16.mxu0 0
    %270 = vmatpush1.bf16.msra.mxu0 0
    %271 = vmatprep.subr.bf16.mxu0 0
    %272 = vmatpush1.bf16.msra.mxu0 0
    %273 = vmatprep.subr.bf16.mxu0 0
    %274 = vmatpush1.bf16.msra.mxu0 0
    %275 = vmatprep.subr.bf16.mxu0 0
    %276 = vmatpush1.bf16.msra.mxu0 0
    %277 = vmatprep.subr.bf16.mxu0 0
    %278 = vmatpush1.bf16.msra.mxu0 0
    %279 = vmatprep.subr.bf16.mxu0 0
    %280 = vmatpush1.bf16.msra.mxu0 0
    %281 = vmatprep.subr.bf16.mxu0 0
    %282 = vmatpush1.bf16.msra.mxu0 0
    %283 = vmatprep.subr.bf16.mxu0 0
    %284 = vmatpush1.bf16.msra.mxu0 0
    %285 = vmatprep.subr.bf16.mxu0 0
    %286 = vmatpush1.bf16.msra.mxu0 0
    %287 = vmatprep.subr.bf16.mxu0 0
    %288 = vmatpush1.bf16.msra.mxu0 0
    %289 = vmatprep.subr.bf16.mxu0 0
    %290 = vmatpush1.bf16.msra.mxu0 0
    %291 = vmatprep.subr.bf16.mxu0 0
    %292 = vmatpush1.bf16.msra.mxu0 0
    %293 = vmatprep.subr.bf16.mxu0 0
    %294 = vmatpush1.bf16.msra.mxu0 0
    %295 = vmatprep.subr.bf16.mxu0 0
    %296 = vmatpush1.bf16.msra.mxu0 0
    %297 = vmatprep.mubr.bf16.mxu0 0
    %298 = vmatmul.mubr.bf16.gmra.mrb[0].mxu0 %v263
    %v299 = vpop.f32.mrb[0].mxu0
    %v300 = vadd.f32 0.0, %v299
    %v301 = vpop.f32.mrb[0].mxu0
    %v302 = vpop.f32.mrb[0].mxu0
    %v303 = vpop.f32.mrb[0].mxu0
    %304 = vdwg.mxu0
    %v306 = vrot.slane %v300, 6
    %v308 = vadd.f32 %v172, %v306
    %v309 = vxor.u32 %v308, 2147483648
    %v310 = vmul.f32 %v309, 1.442695
    %v311 = vpow.pop %v310
    %v312 = vadd.f32 %v311, 1.0
    %v313 = vrcp.pop %v312
    %v314 = vmul.f32 1.0, %v313
    %v315 = vtanh.pop %v308
    %v317 = vrot.slane %v251, 6
    %v319 = vmul.f32 %v314, %v317
    %321 = vrot.lane.b32.xlu0 %v315, 64
    %v322 = vpop.permute.xlu0 %321
    %v324 = vmul.f32 %v314, %v322
    %326 = vrot.lane.b32.xlu0 %v324, 32
    %v327 = vpop.permute.xlu0 %326
    %v329 = vadd.f32 %v319, %v327
    %v330 = vtanh.pop %v329
    %332 = vrot.lane.b32.xlu0 %v330, 64
    %v333 = vpop.permute.xlu0 %332
    %v335 = vmul.f32 %v314, %v333
    %v336 = vpack.c.bf16 %v335, %v335
    %v338 = vrot.slane %v336, 1
    %339 = vrot.lane.b32.xlu0 %v338, 32
    %v340 = vpop.permute.xlu0 %339
    %v342 = vsel %vm65, %v340, 0
    %344 = vmatprep.subr.bf16.mxu0 0
    %345 = vmatpush1.bf16.msra.mxu0 %v186
    %346 = vmatprep.subr.bf16.mxu0 0
    %347 = vmatpush1.bf16.msra.mxu0 %v187
    %348 = vmatprep.subr.bf16.mxu0 0
    %349 = vmatpush1.bf16.msra.mxu0 0
    %350 = vmatprep.subr.bf16.mxu0 0
    %351 = vmatpush1.bf16.msra.mxu0 0
    %352 = vmatprep.subr.bf16.mxu0 0
    %353 = vmatpush1.bf16.msra.mxu0 0
    %354 = vmatprep.subr.bf16.mxu0 0
    %355 = vmatpush1.bf16.msra.mxu0 0
    %356 = vmatprep.subr.bf16.mxu0 0
    %357 = vmatpush1.bf16.msra.mxu0 0
    %358 = vmatprep.subr.bf16.mxu0 0
    %359 = vmatpush1.bf16.msra.mxu0 0
    %360 = vmatprep.subr.bf16.mxu0 0
    %361 = vmatpush1.bf16.msra.mxu0 0
    %362 = vmatprep.subr.bf16.mxu0 0
    %363 = vmatpush1.bf16.msra.mxu0 0
    %364 = vmatprep.subr.bf16.mxu0 0
    %365 = vmatpush1.bf16.msra.mxu0 0
    %366 = vmatprep.subr.bf16.mxu0 0
    %367 = vmatpush1.bf16.msra.mxu0 0
    %368 = vmatprep.subr.bf16.mxu0 0
    %369 = vmatpush1.bf16.msra.mxu0 0
    %370 = vmatprep.subr.bf16.mxu0 0
    %371 = vmatpush1.bf16.msra.mxu0 0
    %372 = vmatprep.subr.bf16.mxu0 0
    %373 = vmatpush1.bf16.msra.mxu0 0
    %374 = vmatprep.subr.bf16.mxu0 0
    %375 = vmatpush1.bf16.msra.mxu0 0
    %376 = vmatprep.mubr.bf16.mxu0 0
    %377 = vmatmul.mubr.bf16.gmra.mrb[0].mxu0 %v342
    %v378 = vpop.f32.mrb[0].mxu0
    %v379 = vadd.f32 0.0, %v378
    %v380 = vpop.f32.mrb[0].mxu0
    %v381 = vpop.f32.mrb[0].mxu0
    %v382 = vpop.f32.mrb[0].mxu0
    %383 = vdwg.mxu0
    %v385 = vrot.slane %v379, 4
    %v387 = vadd.f32 %v172, %v385
    %v388 = vxor.u32 %v387, 2147483648
    %v389 = vmul.f32 %v388, 1.442695
    %v390 = vpow.pop %v389
    %v391 = vadd.f32 %v390, 1.0
    %v392 = vrcp.pop %v391
    %v393 = vmul.f32 1.0, %v392
    %v394 = vtanh.pop %v387
    %v396 = vrot.slane %v329, 6
    %v398 = vmul.f32 %v393, %v396
    %400 = vrot.lane.b32.xlu0 %v394, 64
    %v401 = vpop.permute.xlu0 %400
    %v403 = vmul.f32 %v393, %v401
    %405 = vrot.lane.b32.xlu0 %v403, 32
    %v406 = vpop.permute.xlu0 %405
    %v408 = vadd.f32 %v398, %v406
    %v409 = vtanh.pop %v408
    %411 = vrot.lane.b32.xlu0 %v409, 64
    %v412 = vpop.permute.xlu0 %411
    %v414 = vmul.f32 %v393, %v412
    %v415 = vpack.c.bf16 %v414, %v414
    %v417 = vrot.slane %v415, 2
    %418 = vrot.lane.b32.xlu0 %v417, 32
    %v419 = vpop.permute.xlu0 %418
    %v421 = vsel %vm65, %v419, 0
    %423 = vmatprep.subr.bf16.mxu0 0
    %424 = vmatpush1.bf16.msra.mxu0 %v186
    %425 = vmatprep.subr.bf16.mxu0 0
    %426 = vmatpush1.bf16.msra.mxu0 %v187
    %427 = vmatprep.subr.bf16.mxu0 0
    %428 = vmatpush1.bf16.msra.mxu0 0
    %429 = vmatprep.subr.bf16.mxu0 0
    %430 = vmatpush1.bf16.msra.mxu0 0
    %431 = vmatprep.subr.bf16.mxu0 0
    %432 = vmatpush1.bf16.msra.mxu0 0
    %433 = vmatprep.subr.bf16.mxu0 0
    %434 = vmatpush1.bf16.msra.mxu0 0
    %435 = vmatprep.subr.bf16.mxu0 0
    %436 = vmatpush1.bf16.msra.mxu0 0
    %437 = vmatprep.subr.bf16.mxu0 0
    %438 = vmatpush1.bf16.msra.mxu0 0
    %439 = vmatprep.subr.bf16.mxu0 0
    %440 = vmatpush1.bf16.msra.mxu0 0
    %441 = vmatprep.subr.bf16.mxu0 0
    %442 = vmatpush1.bf16.msra.mxu0 0
    %443 = vmatprep.subr.bf16.mxu0 0
    %444 = vmatpush1.bf16.msra.mxu0 0
    %445 = vmatprep.subr.bf16.mxu0 0
    %446 = vmatpush1.bf16.msra.mxu0 0
    %447 = vmatprep.subr.bf16.mxu0 0
    %448 = vmatpush1.bf16.msra.mxu0 0
    %449 = vmatprep.subr.bf16.mxu0 0
    %450 = vmatpush1.bf16.msra.mxu0 0
    %451 = vmatprep.subr.bf16.mxu0 0
    %452 = vmatpush1.bf16.msra.mxu0 0
    %453 = vmatprep.subr.bf16.mxu0 0
    %454 = vmatpush1.bf16.msra.mxu0 0
    %455 = vmatprep.mubr.bf16.mxu0 0
    %456 = vmatmul.mubr.bf16.gmra.mrb[0].mxu0 %v421
    %v457 = vpop.f32.mrb[0].mxu0
    %v458 = vadd.f32 0.0, %v457
    %v459 = vpop.f32.mrb[0].mxu0
    %v460 = vpop.f32.mrb[0].mxu0
    %v461 = vpop.f32.mrb[0].mxu0
    %462 = vdwg.mxu0
    %v464 = vrot.slane %v458, 2
    %v466 = vadd.f32 %v172, %v464
    %v467 = vxor.u32 %v466, 2147483648
    %v468 = vmul.f32 %v467, 1.442695
    %v469 = vpow.pop %v468
    %v470 = vadd.f32 %v469, 1.0
    %v471 = vrcp.pop %v470
    %v472 = vmul.f32 1.0, %v471
    %v473 = vtanh.pop %v466
    %v475 = vrot.slane %v408, 6
    %v477 = vmul.f32 %v472, %v475
    %479 = vrot.lane.b32.xlu0 %v473, 64
    %v480 = vpop.permute.xlu0 %479
    %v482 = vmul.f32 %v472, %v480
    %484 = vrot.lane.b32.xlu0 %v482, 32
    %v485 = vpop.permute.xlu0 %484
    %v487 = vadd.f32 %v477, %v485
    %v488 = vtanh.pop %v487
    %490 = vrot.lane.b32.xlu0 %v488, 64
    %v491 = vpop.permute.xlu0 %490
    %v493 = vmul.f32 %v472, %v491
    %v494 = vpack.c.bf16 %v493, %v493
    %v496 = vrot.slane %v494, 3
    %497 = vrot.lane.b32.xlu0 %v496, 32
    %v498 = vpop.permute.xlu0 %497
    %v500 = vsel %vm65, %v498, 0
    %502 = vmatprep.subr.bf16.mxu0 0
    %503 = vmatpush1.bf16.msra.mxu0 %v186
    %504 = vmatprep.subr.bf16.mxu0 0
    %505 = vmatpush1.bf16.msra.mxu0 %v187
    %506 = vmatprep.subr.bf16.mxu0 0
    %507 = vmatpush1.bf16.msra.mxu0 0
    %508 = vmatprep.subr.bf16.mxu0 0
    %509 = vmatpush1.bf16.msra.mxu0 0
    %510 = vmatprep.subr.bf16.mxu0 0
    %511 = vmatpush1.bf16.msra.mxu0 0
    %512 = vmatprep.subr.bf16.mxu0 0
    %513 = vmatpush1.bf16.msra.mxu0 0
    %514 = vmatprep.subr.bf16.mxu0 0
    %515 = vmatpush1.bf16.msra.mxu0 0
    %516 = vmatprep.subr.bf16.mxu0 0
    %517 = vmatpush1.bf16.msra.mxu0 0
    %518 = vmatprep.subr.bf16.mxu0 0
    %519 = vmatpush1.bf16.msra.mxu0 0
    %520 = vmatprep.subr.bf16.mxu0 0
    %521 = vmatpush1.bf16.msra.mxu0 0
    %522 = vmatprep.subr.bf16.mxu0 0
    %523 = vmatpush1.bf16.msra.mxu0 0
    %524 = vmatprep.subr.bf16.mxu0 0
    %525 = vmatpush1.bf16.msra.mxu0 0
    %526 = vmatprep.subr.bf16.mxu0 0
    %527 = vmatpush1.bf16.msra.mxu0 0
    %528 = vmatprep.subr.bf16.mxu0 0
    %529 = vmatpush1.bf16.msra.mxu0 0
    %530 = vmatprep.subr.bf16.mxu0 0
    %531 = vmatpush1.bf16.msra.mxu0 0
    %532 = vmatprep.subr.bf16.mxu0 0
    %533 = vmatpush1.bf16.msra.mxu0 0
    %534 = vmatprep.mubr.bf16.mxu0 0
    %535 = vmatmul.mubr.bf16.gmra.mrb[0].mxu0 %v500
    %v536 = vpop.f32.mrb[0].mxu0
    %v537 = vadd.f32 0.0, %v536
    %v538 = vpop.f32.mrb[0].mxu0
    %v539 = vpop.f32.mrb[0].mxu0
    %v540 = vpop.f32.mrb[0].mxu0
    %541 = vdwg.mxu0
    %v542 = vadd.f32 %v175, %v537
    %v543 = vxor.u32 %v542, 2147483648
    %v544 = vmul.f32 %v543, 1.442695
    %v545 = vpow.pop %v544
    %v546 = vadd.f32 %v545, 1.0
    %v547 = vrcp.pop %v546
    %v548 = vmul.f32 1.0, %v547
    %v549 = vtanh.pop %v542
    %v551 = vrot.slane %v487, 6
    %v553 = vmul.f32 %v548, %v551
    %555 = vrot.lane.b32.xlu0 %v549, 64
    %v556 = vpop.permute.xlu0 %555
    %v558 = vmul.f32 %v548, %v556
    %560 = vrot.lane.b32.xlu0 %v558, 32
    %v561 = vpop.permute.xlu0 %560
    %v563 = vadd.f32 %v553, %v561
    %v564 = vtanh.pop %v563
    %566 = vrot.lane.b32.xlu0 %v564, 64
    %v567 = vpop.permute.xlu0 %566
    %v569 = vmul.f32 %v548, %v567
    %v570 = vpack.c.bf16 %v569, %v569
    %572 = vrot.lane.b32.xlu0 %v570, 32
    %v573 = vpop.permute.xlu0 %572
    %v575 = vsel %vm65, %v573, 0
    %577 = vmatprep.subr.bf16.mxu0 0
    %578 = vmatpush1.bf16.msra.mxu0 %v186
    %579 = vmatprep.subr.bf16.mxu0 0
    %580 = vmatpush1.bf16.msra.mxu0 %v187
    %581 = vmatprep.subr.bf16.mxu0 0
    %582 = vmatpush1.bf16.msra.mxu0 0
    %583 = vmatprep.subr.bf16.mxu0 0
    %584 = vmatpush1.bf16.msra.mxu0 0
    %585 = vmatprep.subr.bf16.mxu0 0
    %586 = vmatpush1.bf16.msra.mxu0 0
    %587 = vmatprep.subr.bf16.mxu0 0
    %588 = vmatpush1.bf16.msra.mxu0 0
    %589 = vmatprep.subr.bf16.mxu0 0
    %590 = vmatpush1.bf16.msra.mxu0 0
    %591 = vmatprep.subr.bf16.mxu0 0
    %592 = vmatpush1.bf16.msra.mxu0 0
    %593 = vmatprep.subr.bf16.mxu0 0
    %594 = vmatpush1.bf16.msra.mxu0 0
    %595 = vmatprep.subr.bf16.mxu0 0
    %596 = vmatpush1.bf16.msra.mxu0 0
    %597 = vmatprep.subr.bf16.mxu0 0
    %598 = vmatpush1.bf16.msra.mxu0 0
    %599 = vmatprep.subr.bf16.mxu0 0
    %600 = vmatpush1.bf16.msra.mxu0 0
    %601 = vmatprep.subr.bf16.mxu0 0
    %602 = vmatpush1.bf16.msra.mxu0 0
    %603 = vmatprep.subr.bf16.mxu0 0
    %604 = vmatpush1.bf16.msra.mxu0 0
    %605 = vmatprep.subr.bf16.mxu0 0
    %606 = vmatpush1.bf16.msra.mxu0 0
    %607 = vmatprep.subr.bf16.mxu0 0
    %608 = vmatpush1.bf16.msra.mxu0 0
    %609 = vmatprep.mubr.bf16.mxu0 0
    %610 = vmatmul.mubr.bf16.gmra.mrb[0].mxu0 %v575
    %v611 = vpop.f32.mrb[0].mxu0
    %v612 = vadd.f32 0.0, %v611
    %v613 = vpop.f32.mrb[0].mxu0
    %v614 = vpop.f32.mrb[0].mxu0
    %v615 = vpop.f32.mrb[0].mxu0
    %616 = vdwg.mxu0
    %v618 = vrot.slane %v612, 6
    %v620 = vadd.f32 %v175, %v618
    %v621 = vxor.u32 %v620, 2147483648
    %v622 = vmul.f32 %v621, 1.442695
    %v623 = vpow.pop %v622
    %v624 = vadd.f32 %v623, 1.0
    %v625 = vrcp.pop %v624
    %v626 = vmul.f32 1.0, %v625
    %v627 = vtanh.pop %v620
    %v629 = vrot.slane %v563, 6
    %v631 = vmul.f32 %v626, %v629
    %633 = vrot.lane.b32.xlu0 %v627, 64
    %v634 = vpop.permute.xlu0 %633
    %v636 = vmul.f32 %v626, %v634
    %638 = vrot.lane.b32.xlu0 %v636, 32
    %v639 = vpop.permute.xlu0 %638
    %v641 = vadd.f32 %v631, %v639
    %v642 = vtanh.pop %v641
    %644 = vrot.lane.b32.xlu0 %v642, 64
    %v645 = vpop.permute.xlu0 %644
    %v647 = vmul.f32 %v626, %v645
    %v648 = vpack.c.bf16 %v647, %v647
    %v650 = vrot.slane %v648, 1
    %651 = vrot.lane.b32.xlu0 %v650, 32
    %v652 = vpop.permute.xlu0 %651
    %v654 = vsel %vm65, %v652, 0
    %656 = vmatprep.subr.bf16.mxu0 0
    %657 = vmatpush1.bf16.msra.mxu0 %v186
    %658 = vmatprep.subr.bf16.mxu0 0
    %659 = vmatpush1.bf16.msra.mxu0 %v187
    %660 = vmatprep.subr.bf16.mxu0 0
    %661 = vmatpush1.bf16.msra.mxu0 0
    %662 = vmatprep.subr.bf16.mxu0 0
    %663 = vmatpush1.bf16.msra.mxu0 0
    %664 = vmatprep.subr.bf16.mxu0 0
    %665 = vmatpush1.bf16.msra.mxu0 0
    %666 = vmatprep.subr.bf16.mxu0 0
    %667 = vmatpush1.bf16.msra.mxu0 0
    %668 = vmatprep.subr.bf16.mxu0 0
    %669 = vmatpush1.bf16.msra.mxu0 0
    %670 = vmatprep.subr.bf16.mxu0 0
    %671 = vmatpush1.bf16.msra.mxu0 0
    %672 = vmatprep.subr.bf16.mxu0 0
    %673 = vmatpush1.bf16.msra.mxu0 0
    %674 = vmatprep.subr.bf16.mxu0 0
    %675 = vmatpush1.bf16.msra.mxu0 0
    %676 = vmatprep.subr.bf16.mxu0 0
    %677 = vmatpush1.bf16.msra.mxu0 0
    %678 = vmatprep.subr.bf16.mxu0 0
    %679 = vmatpush1.bf16.msra.mxu0 0
    %680 = vmatprep.subr.bf16.mxu0 0
    %681 = vmatpush1.bf16.msra.mxu0 0
    %682 = vmatprep.subr.bf16.mxu0 0
    %683 = vmatpush1.bf16.msra.mxu0 0
    %684 = vmatprep.subr.bf16.mxu0 0
    %685 = vmatpush1.bf16.msra.mxu0 0
    %686 = vmatprep.subr.bf16.mxu0 0
    %687 = vmatpush1.bf16.msra.mxu0 0
    %688 = vmatprep.mubr.bf16.mxu0 0
    %689 = vmatmul.mubr.bf16.gmra.mrb[0].mxu0 %v654
    %v690 = vpop.f32.mrb[0].mxu0
    %v691 = vadd.f32 0.0, %v690
    %v692 = vpop.f32.mrb[0].mxu0
    %v693 = vpop.f32.mrb[0].mxu0
    %v694 = vpop.f32.mrb[0].mxu0
    %695 = vdwg.mxu0
    %v697 = vrot.slane %v691, 4
    %v699 = vadd.f32 %v175, %v697
    %v700 = vxor.u32 %v699, 2147483648
    %v701 = vmul.f32 %v700, 1.442695
    %v702 = vpow.pop %v701
    %v703 = vadd.f32 %v702, 1.0
    %v704 = vrcp.pop %v703
    %v705 = vmul.f32 1.0, %v704
    %v706 = vtanh.pop %v699
    %v708 = vrot.slane %v641, 6
    %v710 = vmul.f32 %v705, %v708
    %712 = vrot.lane.b32.xlu0 %v706, 64
    %v713 = vpop.permute.xlu0 %712
    %v715 = vmul.f32 %v705, %v713
    %717 = vrot.lane.b32.xlu0 %v715, 32
    %v718 = vpop.permute.xlu0 %717
    %v720 = vadd.f32 %v710, %v718
    %v721 = vtanh.pop %v720
    %723 = vrot.lane.b32.xlu0 %v721, 64
    %v724 = vpop.permute.xlu0 %723
    %v726 = vmul.f32 %v705, %v724
    %v727 = vpack.c.bf16 %v726, %v726
    %v729 = vrot.slane %v727, 2
    %730 = vrot.lane.b32.xlu0 %v729, 32
    %v731 = vpop.permute.xlu0 %730
    %v733 = vsel %vm65, %v731, 0
    %735 = vmatprep.subr.bf16.mxu0 0
    %736 = vmatpush1.bf16.msra.mxu0 %v186
    %737 = vmatprep.subr.bf16.mxu0 0
    %738 = vmatpush1.bf16.msra.mxu0 %v187
    %739 = vmatprep.subr.bf16.mxu0 0
    %740 = vmatpush1.bf16.msra.mxu0 0
    %741 = vmatprep.subr.bf16.mxu0 0
    %742 = vmatpush1.bf16.msra.mxu0 0
    %743 = vmatprep.subr.bf16.mxu0 0
    %744 = vmatpush1.bf16.msra.mxu0 0
    %745 = vmatprep.subr.bf16.mxu0 0
    %746 = vmatpush1.bf16.msra.mxu0 0
    %747 = vmatprep.subr.bf16.mxu0 0
    %748 = vmatpush1.bf16.msra.mxu0 0
    %749 = vmatprep.subr.bf16.mxu0 0
    %750 = vmatpush1.bf16.msra.mxu0 0
    %751 = vmatprep.subr.bf16.mxu0 0
    %752 = vmatpush1.bf16.msra.mxu0 0
    %753 = vmatprep.subr.bf16.mxu0 0
    %754 = vmatpush1.bf16.msra.mxu0 0
    %755 = vmatprep.subr.bf16.mxu0 0
    %756 = vmatpush1.bf16.msra.mxu0 0
    %757 = vmatprep.subr.bf16.mxu0 0
    %758 = vmatpush1.bf16.msra.mxu0 0
    %759 = vmatprep.subr.bf16.mxu0 0
    %760 = vmatpush1.bf16.msra.mxu0 0
    %761 = vmatprep.subr.bf16.mxu0 0
    %762 = vmatpush1.bf16.msra.mxu0 0
    %763 = vmatprep.subr.bf16.mxu0 0
    %764 = vmatpush1.bf16.msra.mxu0 0
    %765 = vmatprep.subr.bf16.mxu0 0
    %766 = vmatpush1.bf16.msra.mxu0 0
    %767 = vmatprep.mubr.bf16.mxu0 0
    %768 = vmatmul.mubr.bf16.gmra.mrb[0].mxu0 %v733
    %v769 = vpop.f32.mrb[0].mxu0
    %v770 = vadd.f32 0.0, %v769
    %v771 = vpop.f32.mrb[0].mxu0
    %v772 = vpop.f32.mrb[0].mxu0
    %v773 = vpop.f32.mrb[0].mxu0
    %774 = vdwg.mxu0
    %v776 = vrot.slane %v770, 2
    %v778 = vadd.f32 %v175, %v776
    %v779 = vxor.u32 %v778, 2147483648
    %v780 = vmul.f32 %v779, 1.442695
    %v781 = vpow.pop %v780
    %v782 = vadd.f32 %v781, 1.0
    %v783 = vrcp.pop %v782
    %v784 = vmul.f32 1.0, %v783
    %v785 = vtanh.pop %v778
    %v787 = vrot.slane %v720, 6
    %v789 = vmul.f32 %v784, %v787
    %791 = vrot.lane.b32.xlu0 %v785, 64
    %v792 = vpop.permute.xlu0 %791
    %v794 = vmul.f32 %v784, %v792
    %796 = vrot.lane.b32.xlu0 %v794, 32
    %v797 = vpop.permute.xlu0 %796
    %v799 = vadd.f32 %v789, %v797
    %v800 = vtanh.pop %v799
    %802 = vrot.lane.b32.xlu0 %v800, 64
    %v803 = vpop.permute.xlu0 %802
    %v805 = vmul.f32 %v784, %v803
    %807 = vrot.lane.b32.xlu0 %v257, 32
    %v808 = vpop.permute.xlu0 %807
    %vm810 = vcmask 254976
    %811 = vst.msk [vmem:[#allocation8] sm:$0x3] %vm810, %v808
    %813 = vrot.lane.b32.xlu0 %v335, 32
    %v814 = vpop.permute.xlu0 %813
    %s816 = scalar_lea.vmem [#allocation8], 2
    %vm817 = vcmask 257026
    %818 = vst.msk [vmem:[%s816 - $0x2] sm:$0xc] %vm817, %v814
    %820 = vrot.lane.b32.xlu0 %v414, 32
    %v821 = vpop.permute.xlu0 %820
    %s823 = scalar_lea.vmem [#allocation8], 4
    %vm824 = vcmask 259076
    %825 = vst.msk [vmem:[%s823 - $0x4] sm:$0x30] %vm824, %v821
    %827 = vrot.lane.b32.xlu0 %v493, 32
    %v828 = vpop.permute.xlu0 %827
    %s830 = scalar_lea.vmem [#allocation8], 6
    %vm831 = vcmask 261126
    %832 = vst.msk [vmem:[%s830 - $0x6] sm:$0xc0] %vm831, %v828
    %834 = vrot.lane.b32.xlu0 %v569, 32
    %v835 = vpop.permute.xlu0 %834
    %s837 = scalar_lea.vmem [#allocation8], 8
    %838 = vst.msk [vmem:[%s837] sm:$0x3] %vm810, %v835
    %840 = vrot.lane.b32.xlu0 %v647, 32
    %v841 = vpop.permute.xlu0 %840
    %s843 = scalar_lea.vmem [#allocation8], 10
    %844 = vst.msk [vmem:[%s843 - $0x2] sm:$0xc] %vm817, %v841
    %846 = vrot.lane.b32.xlu0 %v726, 32
    %v847 = vpop.permute.xlu0 %846
    %s849 = scalar_lea.vmem [#allocation8], 12
    %850 = vst.msk [vmem:[%s849 - $0x4] sm:$0x30] %vm824, %v847
    %852 = vrot.lane.b32.xlu0 %v805, 32
    %v853 = vpop.permute.xlu0 %852
    %s855 = scalar_lea.vmem [#allocation8], 14
    %856 = vst.msk [vmem:[%s855 - $0x6] sm:$0xc0] %vm831, %v853
    // Predicated region
    $region34: #{tpu_custom_call.1} parent=1 // pred_check
      _
    $region35: #{tpu_custom_call.1} parent=1 // pred_check_branch
      %858 = sbr.rel (0) target = $region37
    $region36: #{tpu_custom_call.1} parent=1 // pred_region
      %s860 = ssub.s32 256, 256
      %861 = vsyncadd [#allocation4], %s860
      %s862 = sshll.u32 [#allocation8], 4
      %s863 = int_to_ptr.vmem [resolvable:$true] %s862
      %868 = dma.vmem_to_hbm [thread:$0]  %s863, 256, %s5, [#allocation4], 32, 32, 2
    $region37: #{tpu_custom_call.1} parent=1 // pred_fallthru
      _
    // Predicated region
    $region38: #{tpu_custom_call.1} parent=1 // pred_check
      _
    $region39: #{tpu_custom_call.1} parent=1 // pred_check_branch
      %870 = sbr.rel (0) target = $region41
    $region40: #{tpu_custom_call.1} parent=1 // pred_region
      %871 = dma.done [#allocation4], 256
    $region41: #{tpu_custom_call.1} parent=1 // pred_fallthru
      _
    %872 = vsyncpa [#allocation3], 1
    %873 = vsyncpa [#allocation6], 1
    %874 = vsyncpa [#allocation4], 1

</llo_original>
